<compile_context>
chip_gen: v6e
topology: v6e:2x2x1
jax: 0.10.0
libtpu: 0.0.40
codegen_flags: <defaults>
</compile_context>

<pallas_src>
import functools

import jax
import jax.numpy as jnp
from jax.experimental import pallas as pl
from jax.experimental.pallas import tpu as pltpu

IN_DIM = 106      # shape_params (100) + emotion_params (6)
HID_DIM = 128
OUT_DIM = 56      # 50 exp + 6 pose
LANE = 128
ROW_ALIGN = 16    # bf16 packs two rows per sublane -> 16-row granularity
MAX_TM = 4096     # multiple of 256; ~5.5 MiB double-buffered VMEM at this size


def _mlp_kernel(x_ref, w1_ref, b1_ref, w2_ref, b2_ref, out_ref):
    # Linear(106, 128) + ReLU : bf16 operands (cast in-kernel), f32 MXU acc.
    h = jnp.dot(x_ref[...].astype(jnp.bfloat16), w1_ref[...],
                preferred_element_type=jnp.float32)
    h = jnp.maximum(h + b1_ref[...], 0.0)
    # Linear(128, 56) : pose cols 50:53 already zeroed in folded w2/b2.
    o = jnp.dot(h.astype(jnp.bfloat16), w2_ref[...],
                preferred_element_type=jnp.float32)
    # bf16, 128-lane-dense store (unmasked vst); sliced to 56 in the wrapper.
    out_ref[...] = (o + b2_ref[...]).astype(jnp.bfloat16)


def _round_up(x, m):
    return ((x + m - 1) // m) * m


def _choose_tiling(batch):
    """Pick (tm, b_pad) minimizing padding, >=2 grid steps for v7x megacore."""
    b16 = _round_up(batch, ROW_ALIGN)
    if b16 <= 2 * ROW_ALIGN:
        n_tiles = 1                       # tiny batch: one tile is fine
    else:
        # at least 2 steps so "parallel" sharding feeds both v7x TensorCores
        n_tiles = max(2, pl.cdiv(b16, MAX_TM))
    tm = min(MAX_TM, _round_up(pl.cdiv(b16, n_tiles), ROW_ALIGN))
    b_pad = _round_up(b16, tm)
    return tm, b_pad


def prepare_params(params):
    """One-time conversion to kernel-ready arrays (padded, bf16, mask folded)."""
    w1 = params["w1"].astype(jnp.bfloat16)                       # (106, 128)
    b1 = params["b1"].reshape(1, HID_DIM).astype(jnp.float32)    # (1, 128)
    # Fold `pose_params[:, 0:3] = 0` into the second layer: zeroing output
    # columns 50..52 of w2/b2 makes those outputs exactly zero.
    w2 = params["w2"].at[:, 50:53].set(0.0)
    b2 = params["b2"].at[50:53].set(0.0)
    w2_p = jnp.zeros((HID_DIM, LANE), jnp.bfloat16).at[:, :OUT_DIM].set(
        w2.astype(jnp.bfloat16))                                 # (128, 128)
    b2_p = jnp.zeros((1, LANE), jnp.float32).at[0, :OUT_DIM].set(
        b2.astype(jnp.float32))                                  # (1, 128)
    return {"w1": w1, "b1": b1, "w2": w2_p, "b2": b2_p}


@functools.partial(jax.jit, static_argnames=("tm", "b_pad"))
def _forward_impl(emo, shape, w1, b1, w2, b2, *, tm, b_pad):
    b = shape.shape[0]
    # concat (and minimal batch pad, when needed) fuse into a single XLA pass;
    # no separate bf16 cast pass — the cast happens in-kernel on VMEM data.
    x = jnp.concatenate([shape, emo], axis=1)                    # (b, 106) f32
    if b_pad != b:
        x = jnp.pad(x, ((0, b_pad - b), (0, 0)))

    weight_bytes = (IN_DIM * HID_DIM * 2 + HID_DIM * LANE * 2
                    + HID_DIM * 4 + LANE * 4)
    out = pl.pallas_call(
        _mlp_kernel,
        out_shape=jax.ShapeDtypeStruct((b_pad, LANE), jnp.bfloat16),
        grid=(b_pad // tm,),
        in_specs=[
            # x: last dim = full array dim (106), so no lane padding needed.
            pl.BlockSpec((tm, IN_DIM), lambda i: (i, 0)),
            pl.BlockSpec((IN_DIM, HID_DIM), lambda i: (0, 0)),
            pl.BlockSpec((1, HID_DIM), lambda i: (0, 0)),
            pl.BlockSpec((HID_DIM, LANE), lambda i: (0, 0)),
            pl.BlockSpec((1, LANE), lambda i: (0, 0)),
        ],
        out_specs=pl.BlockSpec((tm, LANE), lambda i: (i, 0)),
        compiler_params=pltpu.CompilerParams(
            dimension_semantics=("parallel",)),
        cost_estimate=pl.CostEstimate(
            flops=2 * b_pad * (IN_DIM * HID_DIM + HID_DIM * LANE),
            transcendentals=0,
            bytes_accessed=b_pad * (IN_DIM * 4 + LANE * 2) + weight_bytes),
    )(x, w1, b1, w2, b2)

    out = out[:b, :OUT_DIM].astype(jnp.float32)
    exp_params = out[:, :50]
    pose_params = out[:, 50:]   # cols 0..2 exactly zero via folded weights
    return exp_params, pose_params


def my_net_forward(my_emotion_params, shape_params, prepared):
    """JAX/Pallas equivalent of MyNet.forward. Returns (exp_params, pose_params)."""
    if shape_params is None:
        # TODO(synk): dead branch in the original module (a 6-feature input
        # cannot feed nn.Linear(106, 128)); guard instead of emulating it.
        raise ValueError("shape_params is required: Linear expects 106 features")
    assert shape_params.shape[0] == my_emotion_params.shape[0]
    assert shape_params.shape[1] + my_emotion_params.shape[1] == IN_DIM

    b = shape_params.shape[0]
    tm, b_pad = _choose_tiling(b)
    return _forward_impl(my_emotion_params.astype(jnp.float32),
                         shape_params.astype(jnp.float32),
                         prepared["w1"], prepared["b1"],
                         prepared["w2"], prepared["b2"],
                         tm=tm, b_pad=b_pad)


def init_params(key):
    """Deterministic init matching nn.Linear default (uniform +-1/sqrt(fan_in))."""
    k1, k2, k3, k4 = jax.random.split(key, 4)
    bound1 = 1.0 / jnp.sqrt(jnp.float32(IN_DIM))
    bound2 = 1.0 / jnp.sqrt(jnp.float32(HID_DIM))
    return {
        # stored as (in, out) so the kernel does x @ W
        "w1": jax.random.uniform(k1, (IN_DIM, HID_DIM), jnp.float32,
                                 -bound1, bound1),
        "b1": jax.random.uniform(k2, (HID_DIM,), jnp.float32, -bound1, bound1),
        "w2": jax.random.uniform(k3, (HID_DIM, OUT_DIM), jnp.float32,
                                 -bound2, bound2),
        "b2": jax.random.uniform(k4, (OUT_DIM,), jnp.float32, -bound2, bound2),
    }


def _reference(x, params):
    # Matches the kernel's bf16 rounding of x / w1 / w2 / h, f32 accumulation.
    xb = x.astype(jnp.bfloat16).astype(jnp.float32)
    w1b = params["w1"].astype(jnp.bfloat16).astype(jnp.float32)
    w2b = params["w2"].astype(jnp.bfloat16).astype(jnp.float32)
    h = jnp.maximum(xb @ w1b + params["b1"], 0.0)
    hb = h.astype(jnp.bfloat16).astype(jnp.float32)
    o = hb @ w2b + params["b2"]
    ref_exp = o[:, :50]
    ref_pose = o[:, 50:].at[:, 0:3].set(0.0)
    return ref_exp, ref_pose


if __name__ == "__main__":
    key = jax.random.PRNGKey(0)
    pkey, ekey, skey = jax.random.split(key, 3)
    params = init_params(pkey)
    prepared = prepare_params(params)   # one-time, cached, kernel-ready

    # --- small batch (single grid step, tm=16) ---
    batch = 4
    my_emotion_params = jax.random.normal(ekey, (batch, 6), jnp.float32)
    shape_params = jax.random.normal(skey, (batch, 100), jnp.float32)

    exp_params, pose_params = my_net_forward(my_emotion_params, shape_params,
                                             prepared)
    jax.block_until_ready((exp_params, pose_params))

    x = jnp.concatenate([shape_params, my_emotion_params], axis=1)
    ref_exp, ref_pose = _reference(x, params)
    assert exp_params.shape == (batch, 50)
    assert pose_params.shape == (batch, 6)
    assert jnp.allclose(exp_params, ref_exp, atol=2e-2, rtol=2e-2)
    assert jnp.allclose(pose_params, ref_pose, atol=2e-2, rtol=2e-2)
    assert jnp.all(pose_params[:, 0:3] == 0.0)

    # --- larger batch (2 grid steps, minimal padding: 600 -> 608 rows) ---
    batch2 = 600
    e2key, s2key = jax.random.split(jax.random.PRNGKey(1))
    emo2 = jax.random.normal(e2key, (batch2, 6), jnp.float32)
    shp2 = jax.random.normal(s2key, (batch2, 100), jnp.float32)
    exp2, pose2 = my_net_forward(emo2, shp2, prepared)
    jax.block_until_ready((exp2, pose2))
    ref_exp2, ref_pose2 = _reference(jnp.concatenate([shp2, emo2], axis=1),
                                     params)
    assert exp2.shape == (batch2, 50) and pose2.shape == (batch2, 6)
    assert jnp.allclose(exp2, ref_exp2, atol=2e-2, rtol=2e-2)
    assert jnp.allclose(pose2, ref_pose2, atol=2e-2, rtol=2e-2)
    assert jnp.all(pose2[:, 0:3] == 0.0)

    print("KERNEL_OK")
</pallas_src>

<mosaic_0001>
module attributes {stable_mosaic.version = 11 : i64} {
  func.func @_mlp_kernel(%arg0: i32, %arg1: memref<16x106xf32, #tpu.memory_space<vmem>>, %arg2: memref<106x128xbf16, #tpu.memory_space<vmem>>, %arg3: memref<1x128xf32, #tpu.memory_space<vmem>>, %arg4: memref<128x128xbf16, #tpu.memory_space<vmem>>, %arg5: memref<1x128xf32, #tpu.memory_space<vmem>>, %arg6: memref<16x128xbf16, #tpu.memory_space<vmem>>) attributes {dimension_semantics = [#tpu.dimension_semantics<parallel>], iteration_bounds = array<i64: 1>, scalar_prefetch = 0 : i64, scratch_operands = 0 : i64, tpu.core_type = #tpu.core_type<tc>, window_params = [{transform_indices = @transform_0, window_bounds = array<i64: 16, 106>}, {pipeline_mode = #tpu.pipeline_mode<synchronous>, transform_indices = @transform_1, window_bounds = array<i64: 106, 128>}, {pipeline_mode = #tpu.pipeline_mode<synchronous>, transform_indices = @transform_2, window_bounds = array<i64: 1, 128>}, {pipeline_mode = #tpu.pipeline_mode<synchronous>, transform_indices = @transform_3, window_bounds = array<i64: 128, 128>}, {pipeline_mode = #tpu.pipeline_mode<synchronous>, transform_indices = @transform_4, window_bounds = array<i64: 1, 128>}, {transform_indices = @transform_5, window_bounds = array<i64: 16, 128>}]} {
    %c0 = arith.constant 0 : index
    %c0_0 = arith.constant 0 : index
    %0 = vector.load %arg1[%c0, %c0_0] : memref<16x106xf32, #tpu.memory_space<vmem>>, vector<16x106xf32>
    %1 = arith.truncf %0 : vector<16x106xf32> to vector<16x106xbf16>
    %c0_1 = arith.constant 0 : index
    %c0_2 = arith.constant 0 : index
    %2 = vector.load %arg2[%c0_1, %c0_2] : memref<106x128xbf16, #tpu.memory_space<vmem>>, vector<106x128xbf16>
    %cst = arith.constant dense<0.000000e+00> : vector<16x128xf32>
    %3 = tpu.matmul %1, %2, %cst {dimension_numbers = #tpu.dot_dimension_numbers<[1], [0], [0], [1], [0, 0, 1, 1], [], []>} : vector<16x106xbf16>, vector<106x128xbf16>, vector<16x128xf32> -> vector<16x128xf32>
    %c0_3 = arith.constant 0 : index
    %c0_4 = arith.constant 0 : index
    %4 = vector.load %arg3[%c0_3, %c0_4] : memref<1x128xf32, #tpu.memory_space<vmem>>, vector<1x128xf32>
    %5 = vector.broadcast %4 : vector<1x128xf32> to vector<16x128xf32>
    %6 = arith.addf %3, %5 : vector<16x128xf32>
    %cst_5 = arith.constant 0.000000e+00 : f32
    %7 = vector.broadcast %cst_5 : f32 to vector<16x128xf32>
    %8 = arith.maximumf %6, %7 : vector<16x128xf32>
    %9 = arith.truncf %8 : vector<16x128xf32> to vector<16x128xbf16>
    %c0_6 = arith.constant 0 : index
    %c0_7 = arith.constant 0 : index
    %10 = vector.load %arg4[%c0_6, %c0_7] : memref<128x128xbf16, #tpu.memory_space<vmem>>, vector<128x128xbf16>
    %cst_8 = arith.constant dense<0.000000e+00> : vector<16x128xf32>
    %11 = tpu.matmul %9, %10, %cst_8 {dimension_numbers = #tpu.dot_dimension_numbers<[1], [0], [0], [1], [0, 0, 1, 1], [], []>} : vector<16x128xbf16>, vector<128x128xbf16>, vector<16x128xf32> -> vector<16x128xf32>
    %c0_9 = arith.constant 0 : index
    %c0_10 = arith.constant 0 : index
    %12 = vector.load %arg5[%c0_9, %c0_10] : memref<1x128xf32, #tpu.memory_space<vmem>>, vector<1x128xf32>
    %13 = vector.broadcast %12 : vector<1x128xf32> to vector<16x128xf32>
    %14 = arith.addf %11, %13 : vector<16x128xf32>
    %15 = arith.truncf %14 : vector<16x128xf32> to vector<16x128xbf16>
    %c0_11 = arith.constant 0 : index
    %c0_12 = arith.constant 0 : index
    %16 = vector.load %arg6[%c0_11, %c0_12] : memref<16x128xbf16, #tpu.memory_space<vmem>>, vector<16x128xbf16>
    tpu.vector_store %arg6[%c0_11, %c0_12], %15 {strides = array<i32>} : memref<16x128xbf16, #tpu.memory_space<vmem>>, vector<16x128xbf16>,
    return
  }
  func.func @transform_0(%arg0: i32) -> (i32, i32) {
    %c0_i32 = arith.constant 0 : i32
    %c0_i32_0 = arith.constant 0 : i32
    return %arg0, %c0_i32 : i32, i32
  }
  func.func @transform_1(%arg0: i32) -> (i32, i32) {
    %c0_i32 = arith.constant 0 : i32
    %c0_i32_0 = arith.constant 0 : i32
    %c0_i32_1 = arith.constant 0 : i32
    return %c0_i32, %c0_i32_0 : i32, i32
  }
  func.func @transform_2(%arg0: i32) -> (i32, i32) {
    %c0_i32 = arith.constant 0 : i32
    %c0_i32_0 = arith.constant 0 : i32
    %c0_i32_1 = arith.constant 0 : i32
    return %c0_i32, %c0_i32_0 : i32, i32
  }
  func.func @transform_3(%arg0: i32) -> (i32, i32) {
    %c0_i32 = arith.constant 0 : i32
    %c0_i32_0 = arith.constant 0 : i32
    %c0_i32_1 = arith.constant 0 : i32
    return %c0_i32, %c0_i32_0 : i32, i32
  }
  func.func @transform_4(%arg0: i32) -> (i32, i32) {
    %c0_i32 = arith.constant 0 : i32
    %c0_i32_0 = arith.constant 0 : i32
    %c0_i32_1 = arith.constant 0 : i32
    return %c0_i32, %c0_i32_0 : i32, i32
  }
  func.func @transform_5(%arg0: i32) -> (i32, i32) {
    %c0_i32 = arith.constant 0 : i32
    %c0_i32_0 = arith.constant 0 : i32
    return %arg0, %c0_i32 : i32, i32
  }
}

</mosaic_0001>

<llo_original>
// kernel: _forward_impl.1
$region0: #{_forward_impl.1}
  #allocation0 [shape = 'u32[]', space=smem, size = 0x4, offset = 0x4, fixed_abs, tag = 'smem constant byte address 0x4 - core index']
  #allocation1 [shape = 'u32[144,128]{1,0:T(1,128)}', space=vmem, size = 0x12000, scoped, tag = 'internal scratch']
  %s0 = inlined_call_operand.vmem [shape: f32[16,106], index: 0, kind: input, shape index: {}]
  %s1 = inlined_call_operand.hbm [shape: bf16[106,128], index: 1, kind: input, shape index: {}]
  %s2 = inlined_call_operand.vmem [shape: f32[1,128], index: 2, kind: input, shape index: {}]
  %s3 = inlined_call_operand.hbm [shape: bf16[128,128], index: 3, kind: input, shape index: {}]
  %s4 = inlined_call_operand.vmem [shape: f32[1,128], index: 4, kind: input, shape index: {}]
  %s5 = inlined_call_operand.vmem [shape: bf16[16,128], index: 5, kind: output, shape index: {}]
  %s6 = sld [smem:[#allocation0]]
  $region38: #{_forward_impl.1} parent=0
    _
  %s8 = ssub.s32 1, %s6
  %s9 = scalar_select 0, %s8, %s6
  $region1: #{_forward_impl.1} parent=0
    #allocation2 [shape = 'u8[28672]{0}', space=vmem, size = 0x7000, scoped, tag = 'input window, operand 1, single buffered']
    #allocation3 [shape = 's32[1]{0}', space=sflag, size = 0x4, scoped, tag = 'scoped memory for _forward_impl.1']
    #allocation4 [shape = 'u8[32768]{0}', space=vmem, size = 0x8000, scoped, tag = 'input window, operand 3, single buffered']
    #allocation5 [shape = 's32[1]{0}', space=sflag, size = 0x4, scoped, tag = 'scoped memory for _forward_impl.1']
    %10 = vsyncpa [#allocation3], 0
    %11 = vsyncpa [#allocation5], 0
    // Predicated region
    $region2: #{_forward_impl.1} parent=1 // pred_check
      _
    $region3: #{_forward_impl.1} parent=1 // pred_check_branch
      %13 = sbr.rel (0) target = $region5
    $region4: #{_forward_impl.1} parent=1 // pred_region
      _
    $region5: #{_forward_impl.1} parent=1 // pred_fallthru
      _
    // Predicated region
    $region6: #{_forward_impl.1} parent=1 // pred_check
      _
    $region7: #{_forward_impl.1} parent=1 // pred_check_branch
      %15 = sbr.rel (0) target = $region9
    $region8: #{_forward_impl.1} parent=1 // pred_region
      %s17 = ssub.s32 896, 896
      %18 = vsyncadd [#allocation3], %s17
      %s19 = sshll.u32 [#allocation2], 4
      %s20 = int_to_ptr.vmem [resolvable:$true] %s19
      %25 = dma.hbm_to_vmem [thread:$0]  %s1, 896, %s20, [#allocation3], 64, 64, 4
    $region9: #{_forward_impl.1} parent=1 // pred_fallthru
      _
    // Predicated region
    $region10: #{_forward_impl.1} parent=1 // pred_check
      _
    $region11: #{_forward_impl.1} parent=1 // pred_check_branch
      %27 = sbr.rel (0) target = $region13
    $region12: #{_forward_impl.1} parent=1 // pred_region
      _
    $region13: #{_forward_impl.1} parent=1 // pred_fallthru
      _
    // Predicated region
    $region14: #{_forward_impl.1} parent=1 // pred_check
      _
    $region15: #{_forward_impl.1} parent=1 // pred_check_branch
      %29 = sbr.rel (0) target = $region17
    $region16: #{_forward_impl.1} parent=1 // pred_region
      %s31 = ssub.s32 1024, 1024
      %32 = vsyncadd [#allocation5], %s31
      %s33 = sshll.u32 [#allocation4], 4
      %s34 = int_to_ptr.vmem [resolvable:$true] %s33
      %39 = dma.hbm_to_vmem [thread:$0]  %s3, 1024, %s34, [#allocation5], 64, 64, 4
    $region17: #{_forward_impl.1} parent=1 // pred_fallthru
      _
    // Predicated region
    $region18: #{_forward_impl.1} parent=1 // pred_check
      _
    $region19: #{_forward_impl.1} parent=1 // pred_check_branch
      %41 = sbr.rel (0) target = $region21
    $region20: #{_forward_impl.1} parent=1 // pred_region
      _
    $region21: #{_forward_impl.1} parent=1 // pred_fallthru
      _
    // Predicated region
    $region22: #{_forward_impl.1} parent=1 // pred_check
      _
    $region23: #{_forward_impl.1} parent=1 // pred_check_branch
      %43 = sbr.rel (0) target = $region25
    $region24: #{_forward_impl.1} parent=1 // pred_region
      %44 = dma.done [#allocation3], 896
    $region25: #{_forward_impl.1} parent=1 // pred_fallthru
      _
    // Predicated region
    $region26: #{_forward_impl.1} parent=1 // pred_check
      _
    $region27: #{_forward_impl.1} parent=1 // pred_check_branch
      %46 = sbr.rel (0) target = $region29
    $region28: #{_forward_impl.1} parent=1 // pred_region
      %47 = dma.done [#allocation5], 1024
    $region29: #{_forward_impl.1} parent=1 // pred_fallthru
      _
    %v49 = vld [vmem:[%s0] sm:$0xff]
    %v50 = vld [vmem:[%s0 + $0x8] sm:$0xff]
    %v51 = vpack.c.bf16 %v50, %v49
    %v52 = vld [vmem:[#allocation2] sm:$0xf]
    %v53 = vld [vmem:[#allocation2 + $0x4] sm:$0xf]
    %v54 = vld [vmem:[#allocation2 + $0x8] sm:$0xf]
    %v55 = vld [vmem:[#allocation2 + $0xc] sm:$0xf]
    %v56 = vld [vmem:[#allocation2 + $0x10] sm:$0xf]
    %v57 = vld [vmem:[#allocation2 + $0x14] sm:$0xf]
    %v58 = vld [vmem:[#allocation2 + $0x18] sm:$0xf]
    %v59 = vld [vmem:[#allocation2 + $0x1c] sm:$0xf]
    %v60 = vld [vmem:[#allocation2 + $0x20] sm:$0xf]
    %v61 = vld [vmem:[#allocation2 + $0x24] sm:$0xf]
    %v62 = vld [vmem:[#allocation2 + $0x28] sm:$0xf]
    %v63 = vld [vmem:[#allocation2 + $0x2c] sm:$0xf]
    %v64 = vld [vmem:[#allocation2 + $0x30] sm:$0xf]
    %v65 = vld [vmem:[#allocation2 + $0x34] sm:$0x1]
    %v66 = vld [vmem:[%s2] sm:$0x1]
    %v68 = vlaneseq
    %v69 = vshrl.u32 %v68, 7
    %v70 = vsub.s32 0, %v69
    %v71 = vrot.slane %v66, %v70
    %v87 = vunpack.c.l.b16 %v52
    %v88 = vunpack.c.l.b16 %v53
    %v89 = vunpack.c.l.b16 %v54
    %v90 = vunpack.c.l.b16 %v55
    %v91 = vunpack.c.l.b16 %v56
    %v92 = vunpack.c.l.b16 %v57
    %v93 = vunpack.c.l.b16 %v58
    %v94 = vunpack.c.l.b16 %v59
    %v95 = vunpack.c.l.b16 %v60
    %v96 = vunpack.c.l.b16 %v61
    %v97 = vunpack.c.l.b16 %v62
    %v98 = vunpack.c.l.b16 %v63
    %v99 = vunpack.c.l.b16 %v64
    %v100 = vunpack.c.l.b16 %v65
    %v101 = vpack.c.b16 %v88, %v87
    %v102 = vpack.c.b16 %v90, %v89
    %v103 = vpack.c.b16 %v92, %v91
    %v104 = vpack.c.b16 %v94, %v93
    %v105 = vpack.c.b16 %v96, %v95
    %v106 = vpack.c.b16 %v98, %v97
    %v107 = vpack.c.b16 %v100, %v99
    %vm114 = vcmask 867328
    %v116 = vsel %vm114, %v51, 0
    %vm118 = vcmask 1044480
    %v120 = vsel %vm118, %v107, 0
    %122 = vmatprep.subr.bf16.mxu0 0
    %123 = vmatpush1.bf16.msra.mxu0 0
    %124 = vmatprep.subr.bf16.mxu0 0
    %125 = vmatpush1.bf16.msra.mxu0 %v120
    %126 = vmatprep.subr.bf16.mxu0 0
    %127 = vmatpush1.bf16.msra.mxu0 %v106
    %128 = vmatprep.subr.bf16.mxu0 0
    %129 = vmatpush1.bf16.msra.mxu0 %v105
    %130 = vmatprep.subr.bf16.mxu0 0
    %131 = vmatpush1.bf16.msra.mxu0 %v104
    %132 = vmatprep.subr.bf16.mxu0 0
    %133 = vmatpush1.bf16.msra.mxu0 %v103
    %134 = vmatprep.subr.bf16.mxu0 0
    %135 = vmatpush1.bf16.msra.mxu0 %v102
    %136 = vmatprep.subr.bf16.mxu0 0
    %137 = vmatpush1.bf16.msra.mxu0 %v101
    %138 = vmatprep.subr.bf16.mxu0 0
    %139 = vmatpush2.bf16.msra.mxu0 0
    %140 = vmatprep.subr.bf16.mxu0 0
    %141 = vmatpush2.bf16.msra.mxu0 0
    %142 = vmatprep.subr.bf16.mxu0 0
    %143 = vmatpush2.bf16.msra.mxu0 0
    %144 = vmatprep.subr.bf16.mxu0 0
    %145 = vmatpush2.bf16.msra.mxu0 0
    %146 = vmatprep.subr.bf16.mxu0 0
    %147 = vmatpush2.bf16.msra.mxu0 0
    %148 = vmatprep.subr.bf16.mxu0 0
    %149 = vmatpush2.bf16.msra.mxu0 0
    %150 = vmatprep.subr.bf16.mxu0 0
    %151 = vmatpush2.bf16.msra.mxu0 0
    %152 = vmatprep.subr.bf16.mxu0 0
    %153 = vmatpush2.bf16.msra.mxu0 0
    %154 = vmatprep.mubr.bf16.mxu0 0
    %155 = vmatmul.mubr.bf16.gmra.mxu0 %v116
    %v156 = vpop.f32.mrf.mxu0
    %v157 = vadd.f32 %v71, %v156
    %v158 = vpop.f32.mrf.mxu0
    %v159 = vpop.f32.mrf.mxu0
    %v160 = vadd.f32 %v71, %v159
    %v161 = vpop.f32.mrf.mxu0
    %162 = vdwg.mxu0
    %v163 = vmax.f32 %v157, 0.0
    %v164 = vmax.f32 %v160, 0.0
    %v165 = vpack.c.bf16 %v164, %v163
    %v166 = vld [vmem:[#allocation4] sm:$0xf]
    %v167 = vld [vmem:[#allocation4 + $0x4] sm:$0xf]
    %v168 = vld [vmem:[#allocation4 + $0x8] sm:$0xf]
    %v169 = vld [vmem:[#allocation4 + $0xc] sm:$0xf]
    %v170 = vld [vmem:[#allocation4 + $0x10] sm:$0xf]
    %v171 = vld [vmem:[#allocation4 + $0x14] sm:$0xf]
    %v172 = vld [vmem:[#allocation4 + $0x18] sm:$0xf]
    %v173 = vld [vmem:[#allocation4 + $0x1c] sm:$0xf]
    %v174 = vld [vmem:[#allocation4 + $0x20] sm:$0xf]
    %v175 = vld [vmem:[#allocation4 + $0x24] sm:$0xf]
    %v176 = vld [vmem:[#allocation4 + $0x28] sm:$0xf]
    %v177 = vld [vmem:[#allocation4 + $0x2c] sm:$0xf]
    %v178 = vld [vmem:[#allocation4 + $0x30] sm:$0xf]
    %v179 = vld [vmem:[#allocation4 + $0x34] sm:$0xf]
    %v180 = vld [vmem:[#allocation4 + $0x38] sm:$0xf]
    %v181 = vld [vmem:[#allocation4 + $0x3c] sm:$0xf]
    %v182 = vld [vmem:[%s4] sm:$0x1]
    %v184 = vlaneseq
    %v185 = vshrl.u32 %v184, 7
    %v186 = vsub.s32 0, %v185
    %v187 = vrot.slane %v182, %v186
    %v205 = vunpack.c.l.b16 %v166
    %v206 = vunpack.c.l.b16 %v167
    %v207 = vunpack.c.l.b16 %v168
    %v208 = vunpack.c.l.b16 %v169
    %v209 = vunpack.c.l.b16 %v170
    %v210 = vunpack.c.l.b16 %v171
    %v211 = vunpack.c.l.b16 %v172
    %v212 = vunpack.c.l.b16 %v173
    %v213 = vunpack.c.l.b16 %v174
    %v214 = vunpack.c.l.b16 %v175
    %v215 = vunpack.c.l.b16 %v176
    %v216 = vunpack.c.l.b16 %v177
    %v217 = vunpack.c.l.b16 %v178
    %v218 = vunpack.c.l.b16 %v179
    %v219 = vunpack.c.l.b16 %v180
    %v220 = vunpack.c.l.b16 %v181
    %v221 = vpack.c.b16 %v206, %v205
    %v222 = vpack.c.b16 %v208, %v207
    %v223 = vpack.c.b16 %v210, %v209
    %v224 = vpack.c.b16 %v212, %v211
    %v225 = vpack.c.b16 %v214, %v213
    %v226 = vpack.c.b16 %v216, %v215
    %v227 = vpack.c.b16 %v218, %v217
    %v228 = vpack.c.b16 %v220, %v219
    %237 = vmatprep.subr.bf16.mxu0 0
    %238 = vmatpush1.bf16.msra.mxu0 %v228
    %239 = vmatprep.subr.bf16.mxu0 0
    %240 = vmatpush1.bf16.msra.mxu0 %v227
    %241 = vmatprep.subr.bf16.mxu0 0
    %242 = vmatpush1.bf16.msra.mxu0 %v226
    %243 = vmatprep.subr.bf16.mxu0 0
    %244 = vmatpush1.bf16.msra.mxu0 %v225
    %245 = vmatprep.subr.bf16.mxu0 0
    %246 = vmatpush1.bf16.msra.mxu0 %v224
    %247 = vmatprep.subr.bf16.mxu0 0
    %248 = vmatpush1.bf16.msra.mxu0 %v223
    %249 = vmatprep.subr.bf16.mxu0 0
    %250 = vmatpush1.bf16.msra.mxu0 %v222
    %251 = vmatprep.subr.bf16.mxu0 0
    %252 = vmatpush1.bf16.msra.mxu0 %v221
    %253 = vmatprep.subr.bf16.mxu0 0
    %254 = vmatpush2.bf16.msra.mxu0 0
    %255 = vmatprep.subr.bf16.mxu0 0
    %256 = vmatpush2.bf16.msra.mxu0 0
    %257 = vmatprep.subr.bf16.mxu0 0
    %258 = vmatpush2.bf16.msra.mxu0 0
    %259 = vmatprep.subr.bf16.mxu0 0
    %260 = vmatpush2.bf16.msra.mxu0 0
    %261 = vmatprep.subr.bf16.mxu0 0
    %262 = vmatpush2.bf16.msra.mxu0 0
    %263 = vmatprep.subr.bf16.mxu0 0
    %264 = vmatpush2.bf16.msra.mxu0 0
    %265 = vmatprep.subr.bf16.mxu0 0
    %266 = vmatpush2.bf16.msra.mxu0 0
    %267 = vmatprep.subr.bf16.mxu0 0
    %268 = vmatpush2.bf16.msra.mxu0 0
    %269 = vmatprep.mubr.bf16.mxu0 0
    %270 = vmatmul.mubr.bf16.gmra.mxu0 %v165
    %v271 = vpop.f32.mrf.mxu0
    %v272 = vadd.f32 %v187, %v271
    %v273 = vpop.f32.mrf.mxu0
    %v274 = vpop.f32.mrf.mxu0
    %v275 = vadd.f32 %v187, %v274
    %v276 = vpop.f32.mrf.mxu0
    %277 = vdwg.mxu0
    %v278 = vpack.c.bf16 %v275, %v272
    %v280 = vunpack.c.l.b16 %v278
    %v281 = vunpack.c.h.b16 %v278
    %v282 = vpack.c.b16 %v280, %v280
    %v283 = vpack.c.b16 %v281, %v281
    %286 = vst [vmem:[%s5] sm:$0xf] %v282
    %287 = vst [vmem:[%s5 + $0x4] sm:$0xf] %v283
    // Predicated region
    $region30: #{_forward_impl.1} parent=1 // pred_check
      _
    $region31: #{_forward_impl.1} parent=1 // pred_check_branch
      %289 = sbr.rel (0) target = $region33
    $region32: #{_forward_impl.1} parent=1 // pred_region
      _
    $region33: #{_forward_impl.1} parent=1 // pred_fallthru
      _
    // Predicated region
    $region34: #{_forward_impl.1} parent=1 // pred_check
      _
    $region35: #{_forward_impl.1} parent=1 // pred_check_branch
      %291 = sbr.rel (0) target = $region37
    $region36: #{_forward_impl.1} parent=1 // pred_region
      _
    $region37: #{_forward_impl.1} parent=1 // pred_fallthru
      _
    %292 = vsyncpa [#allocation3], 1
    %293 = vsyncpa [#allocation5], 1

</llo_original>
